<compile_context>
chip_gen: v5e
topology: v5e:2x2
jax: 0.10.0
libtpu: 0.0.40
codegen_flags: <defaults>
</compile_context>

<pallas_src>
import math
import functools

import jax
import jax.numpy as jnp
from jax import lax
from jax.experimental import pallas as pl
from jax.experimental.pallas import tpu as pltpu


def _choose_head_fold(num_heads, head_dim, cap=512):
    """Largest head-fold hf (divisor of H) with hf*D <= cap and a legal lane width."""
    best = None
    for hf in range(1, num_heads + 1):
        if num_heads % hf:
            continue
        db = hf * head_dim
        lane_ok = (hf == num_heads) or (db % 128 == 0)   # full-dim blocks always legal
        if lane_ok and db <= cap:
            best = hf
    return best if best is not None else num_heads


def _attn_kernel(*refs, hf, head_dim, compute_dtype, has_mask, single_tile,
                 t_total, kv_tile, need_pad):
    q_ref, xkv_ref, wk_ref, wv_ref, vb_ref = refs[:5]
    idx = 5
    mv_ref = None
    if has_mask:
        mv_ref = refs[idx]
        idx += 1
    o_ref = refs[idx]
    idx += 1
    if single_tile:
        m_sc = l_sc = acc_sc = None
    else:
        m_sc, l_sc, acc_sc = refs[idx:idx + 3]

    d = head_dim
    ki = pl.program_id(2)
    nk = pl.num_programs(2)
    approx = jnp.dtype(compute_dtype) != jnp.dtype(jnp.float32)

    NN = (((1,), (0,)), ((), ()))   # A @ B
    NT = (((1,), (1,)), ((), ()))   # A @ B.T   (contract last dims, no transpose)

    if not single_tile:
        @pl.when(ki == 0)
        def _init():
            m_sc[...] = jnp.full(m_sc.shape, -jnp.inf, dtype=m_sc.dtype)
            l_sc[...] = jnp.zeros(l_sc.shape, dtype=l_sc.dtype)
            acc_sc[...] = jnp.zeros(acc_sc.shape, dtype=acc_sc.dtype)

    # ---- K / V projection for this kv tile, all `hf` folded heads at once ----
    xkv = xkv_ref[0]                                               # (tk, E)
    valid_row = None
    if need_pad:
        base = ki * kv_tile
        valid_col = (base + lax.broadcasted_iota(jnp.int32, (kv_tile, 1), 0)) < t_total
        valid_row = (base + lax.broadcasted_iota(jnp.int32, (1, kv_tile), 1)) < t_total
        xkv = jnp.where(valid_col, xkv, 0)

    k = lax.dot_general(xkv, wk_ref[...], NN,
                        preferred_element_type=compute_dtype)       # (tk, hf*D)
    v = lax.dot_general(xkv, wv_ref[...], NN,
                        preferred_element_type=jnp.float32)         # (tk, hf*D) f32
    v = v + vb_ref[...]

    q_all = q_ref[0]                                                # (T, hf*D), pre-scaled

    # ---- per-head scores + online softmax (f32) ----
    for h in range(hf):
        cs = slice(h * d, (h + 1) * d)
        s = lax.dot_general(q_all[:, cs], k[:, cs], NT,
                            preferred_element_type=jnp.float32)     # (T, tk)
        if need_pad:
            s = jnp.where(valid_row, s, -jnp.inf)
        vh = v[:, cs].astype(compute_dtype)                         # (tk, D)

        if single_tile:
            m = jnp.max(s, axis=-1, keepdims=True)
            p = jnp.exp(s - m)
            l = jnp.sum(p, axis=-1, keepdims=True)
            pv = lax.dot_general(p.astype(compute_dtype), vh, NN,
                                 preferred_element_type=jnp.float32)
            ctx = pv * pl.reciprocal(l, approx=approx)
            if has_mask:
                ctx = ctx + mv_ref[0, :, cs]
            o_ref[0, :, cs] = ctx.astype(o_ref.dtype)
        else:
            hs = slice(h, h + 1)
            m_prev = m_sc[:, hs]                                    # (T, 1)
            m_new = jnp.maximum(m_prev, jnp.max(s, axis=-1, keepdims=True))
            alpha = jnp.exp(m_prev - m_new)
            p = jnp.exp(s - m_new)
            l_sc[:, hs] = alpha * l_sc[:, hs] + jnp.sum(p, axis=-1, keepdims=True)
            acc_sc[:, cs] = alpha * acc_sc[:, cs] + lax.dot_general(
                p.astype(compute_dtype), vh, NN,
                preferred_element_type=jnp.float32)
            m_sc[:, hs] = m_new

    if not single_tile:
        @pl.when(ki == nk - 1)
        def _finalize():
            for h in range(hf):
                cs = slice(h * d, (h + 1) * d)
                inv = pl.reciprocal(l_sc[:, h:h + 1], approx=approx)
                ctx = acc_sc[:, cs] * inv
                if has_mask:
                    ctx = ctx + mv_ref[0, :, cs]
                o_ref[0, :, cs] = ctx.astype(o_ref.dtype)


def videomae_self_attention(hidden_states, params, *, num_heads,
                            attention_mask=None,
                            compute_dtype=jnp.bfloat16,
                            kv_tile=512,
                            head_block_width_cap=512):
    """hidden_states: [B, T, E]. params: wq/wk/wv (torch [out,in]), q_bias/v_bias."""
    B, T, E = hidden_states.shape
    H = num_heads
    assert E % H == 0
    D = E // H
    scale = 1.0 / math.sqrt(D)

    wq = jnp.asarray(params["wq"], jnp.float32)
    wk = jnp.asarray(params["wk"], jnp.float32)
    wv = jnp.asarray(params["wv"], jnp.float32)
    q_bias = params.get("q_bias")
    v_bias = params.get("v_bias")
    q_bias = jnp.zeros((E,), jnp.float32) if q_bias is None else jnp.asarray(q_bias, jnp.float32)
    v_bias = jnp.zeros((E,), jnp.float32) if v_bias is None else jnp.asarray(v_bias, jnp.float32)

    # Head folding: each grid step handles hf heads (block width DB = hf*D).
    hf = _choose_head_fold(H, D, cap=head_block_width_cap)
    DB = hf * D
    HB = H // hf

    # Q precomputed at full MXU width under XLA; 1/sqrt(D) and q_bias folded in.
    q_all = ((hidden_states.astype(jnp.float32) @ wq.T + q_bias) * scale).astype(compute_dtype)

    x_c = hidden_states.astype(compute_dtype)        # bf16 stream for in-kernel K/V proj
    wk_t = wk.T.astype(compute_dtype)                # (E, E): x @ wk_t == keys
    wv_t = wv.T.astype(compute_dtype)
    vb = v_bias.reshape(1, E)                        # f32

    has_mask = attention_mask is not None

    # kv tile: full T if it fits, otherwise a lane-friendly multiple of 128.
    tk = T if T <= kv_tile else max(128, (kv_tile // 128) * 128)
    nk = pl.cdiv(T, tk)
    need_pad = (T % tk) != 0
    single = (nk == 1)

    in_specs = [
        pl.BlockSpec((1, T, DB), lambda b, h, k: (b, 0, h)),    # Q (pre-scaled, per head block)
        pl.BlockSpec((1, tk, E), lambda b, h, k: (b, k, 0)),    # x kv tile for K/V projection
        pl.BlockSpec((E, DB), lambda b, h, k: (0, h)),          # Wk^T head-block columns
        pl.BlockSpec((E, DB), lambda b, h, k: (0, h)),          # Wv^T head-block columns
        pl.BlockSpec((1, DB), lambda b, h, k: (0, h)),          # v_bias head-block
    ]
    args = [q_all, x_c, wk_t, wv_t, vb]

    if has_mask:
        # Post-softmax additive mask:  (P + m) @ V = P @ V + (m @ X) @ Wv^T + sum(m)*v_bias.
        mask_flat = jnp.broadcast_to(jnp.asarray(attention_mask, jnp.float32),
                                     (B, 1, 1, T)).reshape(B, T)
        mx = jnp.einsum("bt,bte->be", mask_flat, hidden_states.astype(jnp.float32))
        mv = (mx @ wv.T + jnp.sum(mask_flat, axis=1, keepdims=True) * v_bias).reshape(B, 1, E)
        in_specs.append(pl.BlockSpec((1, 1, DB), lambda b, h, k: (b, 0, h)))
        args.append(mv)

    scratch = []
    if not single:
        scratch = [
            pltpu.VMEM((T, hf), jnp.float32),    # running max, one column per folded head
            pltpu.VMEM((T, hf), jnp.float32),    # running sum
            pltpu.VMEM((T, DB), jnp.float32),    # output accumulator (contiguous head cols)
        ]

    kernel = functools.partial(
        _attn_kernel, hf=hf, head_dim=D, compute_dtype=compute_dtype,
        has_mask=has_mask, single_tile=single,
        t_total=T, kv_tile=tk, need_pad=need_pad)

    out = pl.pallas_call(
        kernel,
        out_shape=jax.ShapeDtypeStruct((B, T, E), hidden_states.dtype),
        grid_spec=pltpu.PrefetchScalarGridSpec(
            num_scalar_prefetch=0,
            grid=(B, HB, nk),
            in_specs=in_specs,
            out_specs=pl.BlockSpec((1, T, DB), lambda b, h, k: (b, 0, h)),
            scratch_shapes=scratch),
        compiler_params=pltpu.CompilerParams(
            dimension_semantics=("parallel", "parallel", "arbitrary"),
            vmem_limit_bytes=48 * 1024 * 1024),
    )(*args)
    return out   # already (B, T, E) — no post-kernel transpose


def _reference(hidden_states, params, *, num_heads, attention_mask=None):
    """Pure-JAX f32 reference mirroring the PyTorch forward exactly."""
    B, T, E = hidden_states.shape
    H = num_heads
    D = E // H
    q_bias = params.get("q_bias")
    v_bias = params.get("v_bias")
    q_bias = jnp.zeros((E,), jnp.float32) if q_bias is None else q_bias
    v_bias = jnp.zeros((E,), jnp.float32) if v_bias is None else v_bias

    q = hidden_states @ params["wq"].T + q_bias
    k = hidden_states @ params["wk"].T            # k_bias is zeros in the module
    v = hidden_states @ params["wv"].T + v_bias

    def split(t):
        return jnp.transpose(t.reshape(B, T, H, D), (0, 2, 1, 3))

    q, k, v = split(q), split(k), split(v)
    s = jnp.einsum("bhtd,bhsd->bhts", q, k) / math.sqrt(D)
    p = jax.nn.softmax(s, axis=-1)
    if attention_mask is not None:
        p = p + jnp.broadcast_to(attention_mask, (B, 1, T, T))   # post-softmax add
    ctx = jnp.einsum("bhts,bhsd->bhtd", p, v)
    return jnp.transpose(ctx, (0, 2, 1, 3)).reshape(B, T, E)


if __name__ == "__main__":
    def rand_params(key, E):
        k_q, k_k, k_v, k_qb, k_vb = jax.random.split(key, 5)
        s = 1.0 / math.sqrt(E)
        return {
            "wq": jax.random.uniform(k_q, (E, E), jnp.float32, -s, s),
            "wk": jax.random.uniform(k_k, (E, E), jnp.float32, -s, s),
            "wv": jax.random.uniform(k_v, (E, E), jnp.float32, -s, s),
            "q_bias": jax.random.uniform(k_qb, (E,), jnp.float32, -s, s),
            "v_bias": jax.random.uniform(k_vb, (E,), jnp.float32, -s, s),
        }

    key = jax.random.PRNGKey(0)

    # ---- Case 1: small shapes (single kv-tile fast path, all heads folded) ----
    B, T, E, H = 2, 8, 32, 4
    k_p, k_x, k_m, key = jax.random.split(key, 4)
    x = jax.random.normal(k_x, (B, T, E), jnp.float32)
    params = rand_params(k_p, E)
    attn_mask = jax.random.normal(k_m, (B, 1, 1, T), jnp.float32) * 0.1

    out = videomae_self_attention(x, params, num_heads=H, compute_dtype=jnp.float32)
    jax.block_until_ready(out)
    ref = _reference(x, params, num_heads=H)
    assert jnp.allclose(out, ref, atol=1e-4, rtol=1e-4)

    out_m = videomae_self_attention(x, params, num_heads=H, attention_mask=attn_mask,
                                    compute_dtype=jnp.float32)
    jax.block_until_ready(out_m)
    ref_m = _reference(x, params, num_heads=H, attention_mask=attn_mask)
    assert jnp.allclose(out_m, ref_m, atol=1e-4, rtol=1e-4)

    out_bf = videomae_self_attention(x, params, num_heads=H, attention_mask=attn_mask)
    jax.block_until_ready(out_bf)
    assert jnp.allclose(out_bf, ref_m, atol=5e-2, rtol=5e-2)

    # ---- Case 2: multi kv-tile online softmax + padded last tile ----
    B2, T2, E2, H2 = 1, 200, 64, 4
    k_p2, k_x2, k_m2, key = jax.random.split(key, 4)
    x2 = jax.random.normal(k_x2, (B2, T2, E2), jnp.float32)
    params2 = rand_params(k_p2, E2)
    attn_mask2 = jax.random.normal(k_m2, (B2, 1, 1, T2), jnp.float32) * 0.1

    out2 = videomae_self_attention(x2, params2, num_heads=H2, attention_mask=attn_mask2,
                                   compute_dtype=jnp.float32, kv_tile=128)
    jax.block_until_ready(out2)
    ref2 = _reference(x2, params2, num_heads=H2, attention_mask=attn_mask2)
    assert jnp.allclose(out2, ref2, atol=1e-4, rtol=1e-4)

    out2_bf = videomae_self_attention(x2, params2, num_heads=H2, attention_mask=attn_mask2,
                                      kv_tile=128)
    jax.block_until_ready(out2_bf)
    assert jnp.allclose(out2_bf, ref2, atol=5e-2, rtol=5e-2)

    print("KERNEL_OK")
</pallas_src>

<mosaic_0001>
module attributes {stable_mosaic.version = 11 : i64} {
  func.func @_attn_kernel(%arg0: i32, %arg1: i32, %arg2: i32, %arg3: memref<1x8x32xf32, #tpu.memory_space<vmem>>, %arg4: memref<1x8x32xf32, #tpu.memory_space<vmem>>, %arg5: memref<32x32xf32, #tpu.memory_space<vmem>>, %arg6: memref<32x32xf32, #tpu.memory_space<vmem>>, %arg7: memref<1x32xf32, #tpu.memory_space<vmem>>, %arg8: memref<1x8x32xf32, #tpu.memory_space<vmem>>) attributes {dimension_semantics = [#tpu.dimension_semantics<parallel>, #tpu.dimension_semantics<parallel>, #tpu.dimension_semantics<arbitrary>], iteration_bounds = array<i64: 2, 1, 1>, scalar_prefetch = 0 : i64, scratch_operands = 0 : i64, tpu.core_type = #tpu.core_type<tc>, window_params = [{transform_indices = @transform_0, window_bounds = array<i64: 1, 8, 32>}, {transform_indices = @transform_1, window_bounds = array<i64: 1, 8, 32>}, {transform_indices = @transform_2, window_bounds = array<i64: 32, 32>}, {transform_indices = @transform_3, window_bounds = array<i64: 32, 32>}, {transform_indices = @transform_4, window_bounds = array<i64: 1, 32>}, {transform_indices = @transform_5, window_bounds = array<i64: 1, 8, 32>}]} {
    %c0 = arith.constant 0 : index
    %c0_0 = arith.constant 0 : index
    %c0_1 = arith.constant 0 : index
    %0 = vector.load %arg4[%c0, %c0_0, %c0_1] : memref<1x8x32xf32, #tpu.memory_space<vmem>>, vector<1x8x32xf32>
    %1 = vector.shape_cast %0 : vector<1x8x32xf32> to vector<8x32xf32>
    %c0_2 = arith.constant 0 : index
    %c0_3 = arith.constant 0 : index
    %2 = vector.load %arg5[%c0_2, %c0_3] : memref<32x32xf32, #tpu.memory_space<vmem>>, vector<32x32xf32>
    %cst = arith.constant dense<0.000000e+00> : vector<8x32xf32>
    %3 = tpu.matmul %1, %2, %cst {dimension_numbers = #tpu.dot_dimension_numbers<[1], [0], [0], [1], [0, 0, 1, 1], [], []>} : vector<8x32xf32>, vector<32x32xf32>, vector<8x32xf32> -> vector<8x32xf32>
    %c0_4 = arith.constant 0 : index
    %c0_5 = arith.constant 0 : index
    %4 = vector.load %arg6[%c0_4, %c0_5] : memref<32x32xf32, #tpu.memory_space<vmem>>, vector<32x32xf32>
    %cst_6 = arith.constant dense<0.000000e+00> : vector<8x32xf32>
    %5 = tpu.matmul %1, %4, %cst_6 {dimension_numbers = #tpu.dot_dimension_numbers<[1], [0], [0], [1], [0, 0, 1, 1], [], []>} : vector<8x32xf32>, vector<32x32xf32>, vector<8x32xf32> -> vector<8x32xf32>
    %c0_7 = arith.constant 0 : index
    %c0_8 = arith.constant 0 : index
    %6 = vector.load %arg7[%c0_7, %c0_8] : memref<1x32xf32, #tpu.memory_space<vmem>>, vector<1x32xf32>
    %7 = vector.broadcast %6 : vector<1x32xf32> to vector<8x32xf32>
    %8 = arith.addf %5, %7 : vector<8x32xf32>
    %c0_9 = arith.constant 0 : index
    %c0_10 = arith.constant 0 : index
    %c0_11 = arith.constant 0 : index
    %9 = vector.load %arg3[%c0_9, %c0_10, %c0_11] : memref<1x8x32xf32, #tpu.memory_space<vmem>>, vector<1x8x32xf32>
    %10 = vector.shape_cast %9 : vector<1x8x32xf32> to vector<8x32xf32>
    %11 = vector.extract_strided_slice %10 {offsets = [0, 0], sizes = [8, 8], strides = [1, 1]} : vector<8x32xf32> to vector<8x8xf32>
    %12 = vector.extract_strided_slice %3 {offsets = [0, 0], sizes = [8, 8], strides = [1, 1]} : vector<8x32xf32> to vector<8x8xf32>
    %cst_12 = arith.constant dense<0.000000e+00> : vector<8x8xf32>
    %13 = tpu.matmul %11, %12, %cst_12 {dimension_numbers = #tpu.dot_dimension_numbers<[1], [1], [0], [0], [0, 0, 1, 0], [], []>} : vector<8x8xf32>, vector<8x8xf32>, vector<8x8xf32> -> vector<8x8xf32>
    %14 = vector.extract_strided_slice %8 {offsets = [0, 0], sizes = [8, 8], strides = [1, 1]} : vector<8x32xf32> to vector<8x8xf32>
    %cst_13 = arith.constant dense<0xFF800000> : vector<8xf32>
    %15 = vector.multi_reduction <maximumf>, %13, %cst_13 [1] : vector<8x8xf32> to vector<8xf32>
    %16 = vector.shape_cast %15 : vector<8xf32> to vector<8x1xf32>
    %17 = vector.broadcast %16 : vector<8x1xf32> to vector<8x8xf32>
    %18 = arith.subf %13, %17 : vector<8x8xf32>
    %19 = math.exp %18 : vector<8x8xf32>
    %cst_14 = arith.constant dense<0.000000e+00> : vector<8xf32>
    %20 = vector.multi_reduction <add>, %19, %cst_14 [1] : vector<8x8xf32> to vector<8xf32>
    %21 = vector.shape_cast %20 : vector<8xf32> to vector<8x1xf32>
    %cst_15 = arith.constant dense<0.000000e+00> : vector<8x8xf32>
    %22 = tpu.matmul %19, %14, %cst_15 {dimension_numbers = #tpu.dot_dimension_numbers<[1], [0], [0], [1], [0, 0, 1, 1], [], []>} : vector<8x8xf32>, vector<8x8xf32>, vector<8x8xf32> -> vector<8x8xf32>
    %23 = tpu.reciprocal %21 : vector<8x1xf32> -> vector<8x1xf32>
    %24 = vector.broadcast %23 : vector<8x1xf32> to vector<8x8xf32>
    %25 = arith.mulf %22, %24 : vector<8x8xf32>
    %c0_16 = arith.constant 0 : index
    %c0_17 = arith.constant 0 : index
    %c0_18 = arith.constant 0 : index
    %26 = vector.load %arg8[%c0_16, %c0_17, %c0_18] : memref<1x8x32xf32, #tpu.memory_space<vmem>>, vector<1x8x8xf32>
    %27 = vector.shape_cast %26 : vector<1x8x8xf32> to vector<8x8xf32>
    %28 = vector.shape_cast %25 : vector<8x8xf32> to vector<1x8x8xf32>
    tpu.vector_store %arg8[%c0_16, %c0_17, %c0_18], %28 {strides = array<i32>} : memref<1x8x32xf32, #tpu.memory_space<vmem>>, vector<1x8x8xf32>,
    %29 = vector.extract_strided_slice %10 {offsets = [0, 8], sizes = [8, 8], strides = [1, 1]} : vector<8x32xf32> to vector<8x8xf32>
    %30 = vector.extract_strided_slice %3 {offsets = [0, 8], sizes = [8, 8], strides = [1, 1]} : vector<8x32xf32> to vector<8x8xf32>
    %cst_19 = arith.constant dense<0.000000e+00> : vector<8x8xf32>
    %31 = tpu.matmul %29, %30, %cst_19 {dimension_numbers = #tpu.dot_dimension_numbers<[1], [1], [0], [0], [0, 0, 1, 0], [], []>} : vector<8x8xf32>, vector<8x8xf32>, vector<8x8xf32> -> vector<8x8xf32>
    %32 = vector.extract_strided_slice %8 {offsets = [0, 8], sizes = [8, 8], strides = [1, 1]} : vector<8x32xf32> to vector<8x8xf32>
    %cst_20 = arith.constant dense<0xFF800000> : vector<8xf32>
    %33 = vector.multi_reduction <maximumf>, %31, %cst_20 [1] : vector<8x8xf32> to vector<8xf32>
    %34 = vector.shape_cast %33 : vector<8xf32> to vector<8x1xf32>
    %35 = vector.broadcast %34 : vector<8x1xf32> to vector<8x8xf32>
    %36 = arith.subf %31, %35 : vector<8x8xf32>
    %37 = math.exp %36 : vector<8x8xf32>
    %cst_21 = arith.constant dense<0.000000e+00> : vector<8xf32>
    %38 = vector.multi_reduction <add>, %37, %cst_21 [1] : vector<8x8xf32> to vector<8xf32>
    %39 = vector.shape_cast %38 : vector<8xf32> to vector<8x1xf32>
    %cst_22 = arith.constant dense<0.000000e+00> : vector<8x8xf32>
    %40 = tpu.matmul %37, %32, %cst_22 {dimension_numbers = #tpu.dot_dimension_numbers<[1], [0], [0], [1], [0, 0, 1, 1], [], []>} : vector<8x8xf32>, vector<8x8xf32>, vector<8x8xf32> -> vector<8x8xf32>
    %41 = tpu.reciprocal %39 : vector<8x1xf32> -> vector<8x1xf32>
    %42 = vector.broadcast %41 : vector<8x1xf32> to vector<8x8xf32>
    %43 = arith.mulf %40, %42 : vector<8x8xf32>
    %c0_23 = arith.constant 0 : index
    %c0_24 = arith.constant 0 : index
    %c8 = arith.constant 8 : index
    %44 = vector.load %arg8[%c0_23, %c0_24, %c8] : memref<1x8x32xf32, #tpu.memory_space<vmem>>, vector<1x8x8xf32>
    %45 = vector.shape_cast %44 : vector<1x8x8xf32> to vector<8x8xf32>
    %46 = vector.shape_cast %43 : vector<8x8xf32> to vector<1x8x8xf32>
    tpu.vector_store %arg8[%c0_23, %c0_24, %c8], %46 {strides = array<i32>} : memref<1x8x32xf32, #tpu.memory_space<vmem>>, vector<1x8x8xf32>,
    %47 = vector.extract_strided_slice %10 {offsets = [0, 16], sizes = [8, 8], strides = [1, 1]} : vector<8x32xf32> to vector<8x8xf32>
    %48 = vector.extract_strided_slice %3 {offsets = [0, 16], sizes = [8, 8], strides = [1, 1]} : vector<8x32xf32> to vector<8x8xf32>
    %cst_25 = arith.constant dense<0.000000e+00> : vector<8x8xf32>
    %49 = tpu.matmul %47, %48, %cst_25 {dimension_numbers = #tpu.dot_dimension_numbers<[1], [1], [0], [0], [0, 0, 1, 0], [], []>} : vector<8x8xf32>, vector<8x8xf32>, vector<8x8xf32> -> vector<8x8xf32>
    %50 = vector.extract_strided_slice %8 {offsets = [0, 16], sizes = [8, 8], strides = [1, 1]} : vector<8x32xf32> to vector<8x8xf32>
    %cst_26 = arith.constant dense<0xFF800000> : vector<8xf32>
    %51 = vector.multi_reduction <maximumf>, %49, %cst_26 [1] : vector<8x8xf32> to vector<8xf32>
    %52 = vector.shape_cast %51 : vector<8xf32> to vector<8x1xf32>
    %53 = vector.broadcast %52 : vector<8x1xf32> to vector<8x8xf32>
    %54 = arith.subf %49, %53 : vector<8x8xf32>
    %55 = math.exp %54 : vector<8x8xf32>
    %cst_27 = arith.constant dense<0.000000e+00> : vector<8xf32>
    %56 = vector.multi_reduction <add>, %55, %cst_27 [1] : vector<8x8xf32> to vector<8xf32>
    %57 = vector.shape_cast %56 : vector<8xf32> to vector<8x1xf32>
    %cst_28 = arith.constant dense<0.000000e+00> : vector<8x8xf32>
    %58 = tpu.matmul %55, %50, %cst_28 {dimension_numbers = #tpu.dot_dimension_numbers<[1], [0], [0], [1], [0, 0, 1, 1], [], []>} : vector<8x8xf32>, vector<8x8xf32>, vector<8x8xf32> -> vector<8x8xf32>
    %59 = tpu.reciprocal %57 : vector<8x1xf32> -> vector<8x1xf32>
    %60 = vector.broadcast %59 : vector<8x1xf32> to vector<8x8xf32>
    %61 = arith.mulf %58, %60 : vector<8x8xf32>
    %c0_29 = arith.constant 0 : index
    %c0_30 = arith.constant 0 : index
    %c16 = arith.constant 16 : index
    %62 = vector.load %arg8[%c0_29, %c0_30, %c16] : memref<1x8x32xf32, #tpu.memory_space<vmem>>, vector<1x8x8xf32>
    %63 = vector.shape_cast %62 : vector<1x8x8xf32> to vector<8x8xf32>
    %64 = vector.shape_cast %61 : vector<8x8xf32> to vector<1x8x8xf32>
    tpu.vector_store %arg8[%c0_29, %c0_30, %c16], %64 {strides = array<i32>} : memref<1x8x32xf32, #tpu.memory_space<vmem>>, vector<1x8x8xf32>,
    %65 = vector.extract_strided_slice %10 {offsets = [0, 24], sizes = [8, 8], strides = [1, 1]} : vector<8x32xf32> to vector<8x8xf32>
    %66 = vector.extract_strided_slice %3 {offsets = [0, 24], sizes = [8, 8], strides = [1, 1]} : vector<8x32xf32> to vector<8x8xf32>
    %cst_31 = arith.constant dense<0.000000e+00> : vector<8x8xf32>
    %67 = tpu.matmul %65, %66, %cst_31 {dimension_numbers = #tpu.dot_dimension_numbers<[1], [1], [0], [0], [0, 0, 1, 0], [], []>} : vector<8x8xf32>, vector<8x8xf32>, vector<8x8xf32> -> vector<8x8xf32>
    %68 = vector.extract_strided_slice %8 {offsets = [0, 24], sizes = [8, 8], strides = [1, 1]} : vector<8x32xf32> to vector<8x8xf32>
    %cst_32 = arith.constant dense<0xFF800000> : vector<8xf32>
    %69 = vector.multi_reduction <maximumf>, %67, %cst_32 [1] : vector<8x8xf32> to vector<8xf32>
    %70 = vector.shape_cast %69 : vector<8xf32> to vector<8x1xf32>
    %71 = vector.broadcast %70 : vector<8x1xf32> to vector<8x8xf32>
    %72 = arith.subf %67, %71 : vector<8x8xf32>
    %73 = math.exp %72 : vector<8x8xf32>
    %cst_33 = arith.constant dense<0.000000e+00> : vector<8xf32>
    %74 = vector.multi_reduction <add>, %73, %cst_33 [1] : vector<8x8xf32> to vector<8xf32>
    %75 = vector.shape_cast %74 : vector<8xf32> to vector<8x1xf32>
    %cst_34 = arith.constant dense<0.000000e+00> : vector<8x8xf32>
    %76 = tpu.matmul %73, %68, %cst_34 {dimension_numbers = #tpu.dot_dimension_numbers<[1], [0], [0], [1], [0, 0, 1, 1], [], []>} : vector<8x8xf32>, vector<8x8xf32>, vector<8x8xf32> -> vector<8x8xf32>
    %77 = tpu.reciprocal %75 : vector<8x1xf32> -> vector<8x1xf32>
    %78 = vector.broadcast %77 : vector<8x1xf32> to vector<8x8xf32>
    %79 = arith.mulf %76, %78 : vector<8x8xf32>
    %c0_35 = arith.constant 0 : index
    %c0_36 = arith.constant 0 : index
    %c24 = arith.constant 24 : index
    %80 = vector.load %arg8[%c0_35, %c0_36, %c24] : memref<1x8x32xf32, #tpu.memory_space<vmem>>, vector<1x8x8xf32>
    %81 = vector.shape_cast %80 : vector<1x8x8xf32> to vector<8x8xf32>
    %82 = vector.shape_cast %79 : vector<8x8xf32> to vector<1x8x8xf32>
    tpu.vector_store %arg8[%c0_35, %c0_36, %c24], %82 {strides = array<i32>} : memref<1x8x32xf32, #tpu.memory_space<vmem>>, vector<1x8x8xf32>,
    return
  }
  func.func @transform_0(%arg0: i32, %arg1: i32, %arg2: i32) -> (i32, i32, i32) {
    %c0_i32 = arith.constant 0 : i32
    %c0_i32_0 = arith.constant 0 : i32
    return %arg0, %c0_i32, %arg1 : i32, i32, i32
  }
  func.func @transform_1(%arg0: i32, %arg1: i32, %arg2: i32) -> (i32, i32, i32) {
    %c0_i32 = arith.constant 0 : i32
    %c0_i32_0 = arith.constant 0 : i32
    return %arg0, %arg2, %c0_i32 : i32, i32, i32
  }
  func.func @transform_2(%arg0: i32, %arg1: i32, %arg2: i32) -> (i32, i32) {
    %c0_i32 = arith.constant 0 : i32
    %c0_i32_0 = arith.constant 0 : i32
    return %c0_i32, %arg1 : i32, i32
  }
  func.func @transform_3(%arg0: i32, %arg1: i32, %arg2: i32) -> (i32, i32) {
    %c0_i32 = arith.constant 0 : i32
    %c0_i32_0 = arith.constant 0 : i32
    return %c0_i32, %arg1 : i32, i32
  }
  func.func @transform_4(%arg0: i32, %arg1: i32, %arg2: i32) -> (i32, i32) {
    %c0_i32 = arith.constant 0 : i32
    %c0_i32_0 = arith.constant 0 : i32
    return %c0_i32, %arg1 : i32, i32
  }
  func.func @transform_5(%arg0: i32, %arg1: i32, %arg2: i32) -> (i32, i32, i32) {
    %c0_i32 = arith.constant 0 : i32
    %c0_i32_0 = arith.constant 0 : i32
    return %arg0, %c0_i32, %arg1 : i32, i32, i32
  }
}

</mosaic_0001>

<llo_original>
// kernel: tpu_custom_call.1
$region0: #{tpu_custom_call.1}
  #allocation0 [shape = 'u32[]', space=smem, size = 0x4, offset = 0x4, fixed_abs, tag = 'smem constant byte address 0x4 - core index']
  #allocation1 [shape = 'u32[72,128]{1,0:T(1,128)}', space=vmem, size = 0x9000, scoped, tag = 'internal scratch']
  %s0 = inlined_call_operand.hbm [shape: f32[2,8,32], index: 0, kind: input, shape index: {}]
  %s1 = inlined_call_operand.hbm [shape: f32[2,8,32], index: 1, kind: input, shape index: {}]
  %s2 = inlined_call_operand.hbm [shape: f32[32,32], index: 2, kind: input, shape index: {}]
  %s3 = inlined_call_operand.hbm [shape: f32[32,32], index: 3, kind: input, shape index: {}]
  %s4 = inlined_call_operand.vmem [shape: f32[1,32], index: 4, kind: input, shape index: {}]
  %s5 = inlined_call_operand.hbm [shape: f32[2,8,32], index: 5, kind: output, shape index: {}]
  %s6 = sld [smem:[#allocation0]]
  $region69: #{tpu_custom_call.1} parent=0
    _
  %s8 = ssub.s32 1, %s6
  %s9 = scalar_select 0, %s8, %s6
  $region1: #{tpu_custom_call.1} parent=0
    #allocation2 [shape = 'u8[8192]{0}', space=vmem, size = 0x2000, scoped, tag = 'input window, operand 0']
    #allocation3 [shape = 's32[2]{0}', space=sflag, size = 0x8, scoped, tag = 'scoped memory for tpu_custom_call.1']
    #allocation4 [shape = 's32[2]{0}', space=sflag, size = 0x8, scoped, tag = 'scoped memory for tpu_custom_call.1']
    #allocation5 [shape = 'u8[8192]{0}', space=vmem, size = 0x2000, scoped, tag = 'input window, operand 1']
    #allocation6 [shape = 's32[2]{0}', space=sflag, size = 0x8, scoped, tag = 'scoped memory for tpu_custom_call.1']
    #allocation7 [shape = 'u8[16384]{0}', space=vmem, size = 0x4000, scoped, tag = 'input window, operand 2, single buffered']
    #allocation8 [shape = 'u8[16384]{0}', space=vmem, size = 0x4000, scoped, tag = 'input window, operand 3, single buffered']
    #allocation9 [shape = 's32[1]{0}', space=sflag, size = 0x4, scoped, tag = 'scoped memory for tpu_custom_call.1']
    #allocation10 [shape = 'u8[8192]{0}', space=vmem, size = 0x2000, scoped, tag = 'output window, operand 0']
    %10 = vsyncpa [#allocation3], 0
    %s11 = scalar_lea.sflag [#allocation3], 1
    %12 = vsyncpa %s11, 0
    %13 = vsyncpa [#allocation6], 0
    %s14 = scalar_lea.sflag [#allocation6], 1
    %15 = vsyncpa %s14, 0
    %16 = vsyncpa [#allocation9], 0
    %17 = vsyncpa [#allocation4], 0
    %s18 = scalar_lea.sflag [#allocation4], 1
    %19 = vsyncpa %s18, 0
    loop: start=0, step=1, limit=4
    $region2: #{tpu_custom_call.1} parent=1 // loop_pre_header
      _
    $region3: #{tpu_custom_call.1} parent=1 // loop_header
      %s21 = sphi 0, %s25
      %p22 = scmp.ge.s32.totalorder %s21, 4
      %s28 = sphi 0, %s47
      %s29 = sphi 0, %s43
      %s30 = sphi 0, %s39
      %s31 = sphi 0, %s28
      %s32 = sphi 0, %s29
      %s33 = sphi 0, %s30
      %s34 = sphi 0, %s31
      %s35 = sphi 0, %s32
      %s36 = sphi 0, %s33
      %s52 = sphi 0, %s54
      %s55 = sphi 0, %s52
      %s56 = sphi 0, %s55
      %s72 = sphi 0, %s56
      %s80 = sphi 0, %s82
      %s83 = sphi 0, %s80
      %s84 = sphi 0, %s83
      %s100 = sphi 0, %s84
      %s106 = sphi 0, %s108
      %s109 = sphi 0, %s106
      %s110 = sphi 0, %s109
      %s126 = sphi 0, %s110
      %s132 = sphi 0, %s134
      %s135 = sphi 0, %s132
      %s136 = sphi 0, %s135
      %s152 = sphi 0, %s136
      %s158 = sphi 0, %s160
      %s161 = sphi 0, %s158
      %s162 = sphi 0, %s161
      %s178 = sphi 0, %s162
      %s186 = sphi 0, %s188
      %s189 = sphi 0, %s186
      %s190 = sphi 0, %s189
      %s206 = sphi 0, %s190
    $region4: #{tpu_custom_call.1} parent=1 // loop_header_branch
      %24 = sbr.rel (%p22) target = $region8
    $region5: #{tpu_custom_call.1} parent=1 // loop_body
      %s26 = ssub.s32 %s21, 1
      %s27 = ssub.s32 %s21, 2
      %s37 = sadd.s32 1, %s30
      %p38 = scmp.ge.s32.totalorder %s37, 1
      %s39 = scalar_select %p38, 0, %s37
      %s40 = sadd.s32 1, %s29
      %s41 = scalar_select %p38, %s40, %s29
      %p42 = scmp.ge.s32.totalorder %s41, 1
      %s43 = scalar_select %p42, 0, %s41
      %s44 = sadd.s32 1, %s28
      %s45 = scalar_select %p42, %s44, %s28
      %p46 = scmp.ge.s32.totalorder %s45, 2
      %s47 = scalar_select %p46, 0, %s45
      %s48 = ssub.s32 %s28, %s47
      %s49 = ssub.s32 %s29, %s43
      %s50 = sor.u32 %s48, %s49
      %p51 = scmp.eq.s32.totalorder %s50, 0
      %s53 = sadd.s32 %s52, 1
      %s54 = scalar_select %p51, %s52, %s53
      %p57 = pneg %p51
      %p58 = scmp.eq.s32.totalorder %s21, 1
      %p59 = por %p57, %p58
      %p60 = scmp.ne.s32.totalorder %s52, %s55
      %p61 = scmp.eq.s32.totalorder %s21, 0
      %p62 = por %p60, %p61
      %p63 = scmp.ne.s32.totalorder %s52, %s55
      %p64 = scmp.eq.s32.totalorder %s26, 1
      %p65 = por %p63, %p64
      %p66 = scmp.ne.s32.totalorder %s55, %s56
      %p67 = scmp.eq.s32.totalorder %s26, 0
      %p68 = por %p66, %p67
      %p69 = scmp.ne.s32.totalorder %s55, %s56
      %p70 = scmp.eq.s32.totalorder %s27, 1
      %p71 = por %p69, %p70
      %p73 = scmp.ne.s32.totalorder %s56, %s72
      %p74 = scmp.eq.s32.totalorder %s27, 0
      %p75 = por %p73, %p74
      %s76 = ssub.s32 %s28, %s47
      %s77 = ssub.s32 %s30, %s39
      %s78 = sor.u32 %s76, %s77
      %p79 = scmp.eq.s32.totalorder %s78, 0
      %s81 = sadd.s32 %s80, 1
      %s82 = scalar_select %p79, %s80, %s81
      %p85 = pneg %p79
      %p86 = scmp.eq.s32.totalorder %s21, 1
      %p87 = por %p85, %p86
      %p88 = scmp.ne.s32.totalorder %s80, %s83
      %p89 = scmp.eq.s32.totalorder %s21, 0
      %p90 = por %p88, %p89
      %p91 = scmp.ne.s32.totalorder %s80, %s83
      %p92 = scmp.eq.s32.totalorder %s26, 1
      %p93 = por %p91, %p92
      %p94 = scmp.ne.s32.totalorder %s83, %s84
      %p95 = scmp.eq.s32.totalorder %s26, 0
      %p96 = por %p94, %p95
      %p97 = scmp.ne.s32.totalorder %s83, %s84
      %p98 = scmp.eq.s32.totalorder %s27, 1
      %p99 = por %p97, %p98
      %p101 = scmp.ne.s32.totalorder %s84, %s100
      %p102 = scmp.eq.s32.totalorder %s27, 0
      %p103 = por %p101, %p102
      %s104 = ssub.s32 %s29, %s43
      %p105 = scmp.eq.s32.totalorder %s104, 0
      %s107 = sadd.s32 %s106, 1
      %s108 = scalar_select %p105, %s106, %s107
      %p111 = pneg %p105
      %p112 = scmp.eq.s32.totalorder %s21, 1
      %p113 = por %p111, %p112
      %p114 = scmp.ne.s32.totalorder %s106, %s109
      %p115 = scmp.eq.s32.totalorder %s21, 0
      %p116 = por %p114, %p115
      %p117 = scmp.ne.s32.totalorder %s106, %s109
      %p118 = scmp.eq.s32.totalorder %s26, 1
      %p119 = por %p117, %p118
      %p120 = scmp.ne.s32.totalorder %s109, %s110
      %p121 = scmp.eq.s32.totalorder %s26, 0
      %p122 = por %p120, %p121
      %p123 = scmp.ne.s32.totalorder %s109, %s110
      %p124 = scmp.eq.s32.totalorder %s27, 1
      %p125 = por %p123, %p124
      %p127 = scmp.ne.s32.totalorder %s110, %s126
      %p128 = scmp.eq.s32.totalorder %s27, 0
      %p129 = por %p127, %p128
      %s130 = ssub.s32 %s29, %s43
      %p131 = scmp.eq.s32.totalorder %s130, 0
      %s133 = sadd.s32 %s132, 1
      %s134 = scalar_select %p131, %s132, %s133
      %p137 = pneg %p131
      %p138 = scmp.eq.s32.totalorder %s21, 1
      %p139 = por %p137, %p138
      %p140 = scmp.ne.s32.totalorder %s132, %s135
      %p141 = scmp.eq.s32.totalorder %s21, 0
      %p142 = por %p140, %p141
      %p143 = scmp.ne.s32.totalorder %s132, %s135
      %p144 = scmp.eq.s32.totalorder %s26, 1
      %p145 = por %p143, %p144
      %p146 = scmp.ne.s32.totalorder %s135, %s136
      %p147 = scmp.eq.s32.totalorder %s26, 0
      %p148 = por %p146, %p147
      %p149 = scmp.ne.s32.totalorder %s135, %s136
      %p150 = scmp.eq.s32.totalorder %s27, 1
      %p151 = por %p149, %p150
      %p153 = scmp.ne.s32.totalorder %s136, %s152
      %p154 = scmp.eq.s32.totalorder %s27, 0
      %p155 = por %p153, %p154
      %s156 = ssub.s32 %s29, %s43
      %p157 = scmp.eq.s32.totalorder %s156, 0
      %s159 = sadd.s32 %s158, 1
      %s160 = scalar_select %p157, %s158, %s159
      %p163 = pneg %p157
      %p164 = scmp.eq.s32.totalorder %s21, 1
      %p165 = por %p163, %p164
      %p166 = scmp.ne.s32.totalorder %s158, %s161
      %p167 = scmp.eq.s32.totalorder %s21, 0
      %p168 = por %p166, %p167
      %p169 = scmp.ne.s32.totalorder %s158, %s161
      %p170 = scmp.eq.s32.totalorder %s26, 1
      %p171 = por %p169, %p170
      %p172 = scmp.ne.s32.totalorder %s161, %s162
      %p173 = scmp.eq.s32.totalorder %s26, 0
      %p174 = por %p172, %p173
      %p175 = scmp.ne.s32.totalorder %s161, %s162
      %p176 = scmp.eq.s32.totalorder %s27, 1
      %p177 = por %p175, %p176
      %p179 = scmp.ne.s32.totalorder %s162, %s178
      %p180 = scmp.eq.s32.totalorder %s27, 0
      %p181 = por %p179, %p180
      %s182 = ssub.s32 %s28, %s47
      %s183 = ssub.s32 %s29, %s43
      %s184 = sor.u32 %s182, %s183
      %p185 = scmp.eq.s32.totalorder %s184, 0
      %s187 = sadd.s32 %s186, 1
      %s188 = scalar_select %p185, %s186, %s187
      %p191 = pneg %p185
      %p192 = scmp.eq.s32.totalorder %s21, 1
      %p193 = por %p191, %p192
      %p194 = scmp.ne.s32.totalorder %s186, %s189
      %p195 = scmp.eq.s32.totalorder %s21, 0
      %p196 = por %p194, %p195
      %p197 = scmp.ne.s32.totalorder %s186, %s189
      %p198 = scmp.eq.s32.totalorder %s26, 1
      %p199 = por %p197, %p198
      %p200 = scmp.ne.s32.totalorder %s189, %s190
      %p201 = scmp.eq.s32.totalorder %s26, 0
      %p202 = por %p200, %p201
      %p203 = scmp.ne.s32.totalorder %s189, %s190
      %p204 = scmp.eq.s32.totalorder %s27, 1
      %p205 = por %p203, %p204
      %p207 = scmp.ne.s32.totalorder %s190, %s206
      %p208 = scmp.eq.s32.totalorder %s27, 0
      %p209 = por %p207, %p208
      %p210 = scmp.le.s32.totalorder 1, %s21
      %p211 = scmp.lt.s32.totalorder %s21, 3
      %p212 = pnand %p210, %p211
      %p213 = pneg %p212
      // Predicated region
      $region9: #{tpu_custom_call.1} parent=5 // pred_check
        _
      $region10: #{tpu_custom_call.1} parent=5 // pred_check_branch
        %215 = sbr.rel (%p212) target = $region12
      $region11: #{tpu_custom_call.1} parent=5 // pred_region
        %s216 = ssub.s32 %s21, 1
        // Predicated region
        $region13: #{tpu_custom_call.1} parent=11 // pred_check
          %p217 = pneg %p122
        $region14: #{tpu_custom_call.1} parent=11 // pred_check_branch
          %219 = sbr.rel (%p217) target = $region16
        $region15: #{tpu_custom_call.1} parent=11 // pred_region
          %221 = vsyncadd [#allocation6], 0
          %s222 = smul.addr %s32, 8
          %s223 = scalar_lea.hbm %s2, %s222
          %s224 = sshll.u32 %s223, 4
          %s225 = int_to_ptr.hbm [resolvable:$true] %s224
          %s226 = sshll.u32 [#allocation7], 4
          %s227 = int_to_ptr.vmem [resolvable:$true] %s226
          %232 = dma.hbm_to_vmem [thread:$0]  %s225, 512, %s227, [#allocation6], 128, 128, 8
        $region16: #{tpu_custom_call.1} parent=11 // pred_fallthru
          _
        // Predicated region
        $region17: #{tpu_custom_call.1} parent=11 // pred_check
          %p233 = pneg %p148
        $region18: #{tpu_custom_call.1} parent=11 // pred_check_branch
          %235 = sbr.rel (%p233) target = $region20
        $region19: #{tpu_custom_call.1} parent=11 // pred_region
          %237 = vsyncadd [#allocation9], 0
          %s238 = smul.addr %s32, 8
          %s239 = scalar_lea.hbm %s3, %s238
          %s240 = sshll.u32 %s239, 4
          %s241 = int_to_ptr.hbm [resolvable:$true] %s240
          %s242 = sshll.u32 [#allocation8], 4
          %s243 = int_to_ptr.vmem [resolvable:$true] %s242
          %248 = dma.hbm_to_vmem [thread:$0]  %s241, 512, %s243, [#allocation9], 128, 128, 8
        $region20: #{tpu_custom_call.1} parent=11 // pred_fallthru
          _
        // Predicated region
        $region21: #{tpu_custom_call.1} parent=11 // pred_check
          %p249 = pneg %p174
        $region22: #{tpu_custom_call.1} parent=11 // pred_check_branch
          %251 = sbr.rel (%p249) target = $region24
        $region23: #{tpu_custom_call.1} parent=11 // pred_region
          %p252 = scmp.lt.s32.totalorder %s32, 0
          %s253 = scalar_select %p252, %s32, 0
          %s254 = scalar_lea.vmem %s4, %s253
        $region24: #{tpu_custom_call.1} parent=11 // pred_fallthru
          _
      $region12: #{tpu_custom_call.1} parent=5 // pred_fallthru
        _
      %p255 = scmp.lt.s32.totalorder %s21, 2
      // Predicated region
      $region25: #{tpu_custom_call.1} parent=5 // pred_check
        %p256 = pneg %p255
      $region26: #{tpu_custom_call.1} parent=5 // pred_check_branch
        %258 = sbr.rel (%p256) target = $region28
      $region27: #{tpu_custom_call.1} parent=5 // pred_region
        // Predicated region
        $region29: #{tpu_custom_call.1} parent=27 // pred_check
          %p259 = pneg %p62
        $region30: #{tpu_custom_call.1} parent=27 // pred_check_branch
          %261 = sbr.rel (%p259) target = $region32
        $region31: #{tpu_custom_call.1} parent=27 // pred_region
          %s262 = sand.u32 %s52, 1
          %s263 = scalar_lea.sflag [#allocation3], %s262
          %s264 = sand.u32 %s52, 1
          %s265 = smul.addr %s264, 8
          %s266 = scalar_lea.vmem [#allocation2], %s265
          %268 = vsyncadd %s263, 0
          %s269 = sadd.s32 %s29, %s28
          %s270 = smul.addr %s269, 8
          %s271 = scalar_lea.hbm %s0, %s270
          %s273 = sshll.u32 %s271, 4
          %s274 = int_to_ptr.hbm [resolvable:$true] %s273
          %s275 = sshll.u32 %s266, 4
          %s276 = int_to_ptr.vmem [resolvable:$true] %s275
          %278 = dma.hbm_to_vmem [thread:$0]  %s274, 128, %s276, %s263
        $region32: #{tpu_custom_call.1} parent=27 // pred_fallthru
          _
        // Predicated region
        $region33: #{tpu_custom_call.1} parent=27 // pred_check
          %p279 = pneg %p90
        $region34: #{tpu_custom_call.1} parent=27 // pred_check_branch
          %281 = sbr.rel (%p279) target = $region36
        $region35: #{tpu_custom_call.1} parent=27 // pred_region
          %s282 = sand.u32 %s21, 1
          %s283 = scalar_lea.sflag [#allocation6], %s282
          %s284 = sand.u32 %s80, 1
          %s285 = smul.addr %s284, 8
          %s286 = scalar_lea.vmem [#allocation5], %s285
          %288 = vsyncadd %s283, 0
          %s289 = sadd.s32 %s30, %s28
          %s290 = smul.addr %s289, 8
          %s291 = scalar_lea.hbm %s1, %s290
          %s293 = sshll.u32 %s291, 4
          %s294 = int_to_ptr.hbm [resolvable:$true] %s293
          %s295 = sshll.u32 %s286, 4
          %s296 = int_to_ptr.vmem [resolvable:$true] %s295
          %298 = dma.hbm_to_vmem [thread:$0]  %s294, 128, %s296, %s283
        $region36: #{tpu_custom_call.1} parent=27 // pred_fallthru
          _
      $region28: #{tpu_custom_call.1} parent=5 // pred_fallthru
        _
      %p299 = scmp.le.s32.totalorder 1, %s21
      %p300 = scmp.lt.s32.totalorder %s21, 3
      %p301 = pnand %p299, %p300
      %p302 = pneg %p301
      // Predicated region
      $region37: #{tpu_custom_call.1} parent=5 // pred_check
        _
      $region38: #{tpu_custom_call.1} parent=5 // pred_check_branch
        %304 = sbr.rel (%p301) target = $region40
      $region39: #{tpu_custom_call.1} parent=5 // pred_region
        %s305 = ssub.s32 %s21, 1
        %s306 = sand.u32 %s55, 1
        %s307 = scalar_lea.sflag [#allocation3], %s306
        %s308 = sand.u32 %s55, 1
        %s309 = smul.addr %s308, 8
        %s310 = scalar_lea.vmem [#allocation2], %s309
        // Predicated region
        $region41: #{tpu_custom_call.1} parent=39 // pred_check
          %p311 = pneg %p68
        $region42: #{tpu_custom_call.1} parent=39 // pred_check_branch
          %313 = sbr.rel (%p311) target = $region44
        $region43: #{tpu_custom_call.1} parent=39 // pred_region
          %315 = dma.done %s307, 128
        $region44: #{tpu_custom_call.1} parent=39 // pred_fallthru
          _
        %s316 = sand.u32 %s26, 1
        %s317 = scalar_lea.sflag [#allocation6], %s316
        %s318 = sand.u32 %s83, 1
        %s319 = smul.addr %s318, 8
        %s320 = scalar_lea.vmem [#allocation5], %s319
        // Predicated region
        $region45: #{tpu_custom_call.1} parent=39 // pred_check
          %p321 = pneg %p96
        $region46: #{tpu_custom_call.1} parent=39 // pred_check_branch
          %323 = sbr.rel (%p321) target = $region48
        $region47: #{tpu_custom_call.1} parent=39 // pred_region
          %325 = dma.done %s317, 128
        $region48: #{tpu_custom_call.1} parent=39 // pred_fallthru
          _
        // Predicated region
        $region49: #{tpu_custom_call.1} parent=39 // pred_check
          %p326 = pneg %p122
        $region50: #{tpu_custom_call.1} parent=39 // pred_check_branch
          %328 = sbr.rel (%p326) target = $region52
        $region51: #{tpu_custom_call.1} parent=39 // pred_region
          %330 = dma.done [#allocation6], 512
        $region52: #{tpu_custom_call.1} parent=39 // pred_fallthru
          _
        // Predicated region
        $region53: #{tpu_custom_call.1} parent=39 // pred_check
          %p331 = pneg %p148
        $region54: #{tpu_custom_call.1} parent=39 // pred_check_branch
          %333 = sbr.rel (%p331) target = $region56
        $region55: #{tpu_custom_call.1} parent=39 // pred_region
          %335 = dma.done [#allocation9], 512
        $region56: #{tpu_custom_call.1} parent=39 // pred_fallthru
          _
        %s336 = sand.u32 %s55, 1
        %s337 = scalar_lea.sflag [#allocation3], %s336
        %s338 = sand.u32 %s55, 1
        %s339 = smul.addr %s338, 8
        %s340 = scalar_lea.vmem [#allocation2], %s339
        %p341 = pneg %p68
        %p342 = pneg %p65
        %s343 = sand.u32 %s26, 1
        %s344 = scalar_lea.sflag [#allocation6], %s343
        %s345 = sand.u32 %s83, 1
        %s346 = smul.addr %s345, 8
        %s347 = scalar_lea.vmem [#allocation5], %s346
        %p348 = pneg %p96
        %p349 = pneg %p93
        %p350 = pneg %p122
        %p351 = pneg %p119
        %p352 = pneg %p148
        %p353 = pneg %p145
        %p354 = scmp.lt.s32.totalorder %s32, 0
        %s355 = scalar_select %p354, %s32, 0
        %s356 = scalar_lea.vmem %s4, %s355
        %p357 = pneg %p174
        %p358 = pneg %p171
        %p359 = pneg %p202
        %p360 = pneg %p199
        %s361 = sand.u32 %s189, 1
        %s362 = scalar_lea.sflag [#allocation4], %s361
        %s363 = sand.u32 %s189, 1
        %s364 = smul.addr %s363, 8
        %s365 = scalar_lea.vmem [#allocation10], %s364
        %p366 = scmp.lt.s32.totalorder %s32, 0
        %s367 = scalar_select %p366, %s32, 0
        %s368 = scalar_lea.vmem %s4, %s367
        %v369 = vld [vmem:[%s320] sm:$0xff]
        %v370 = vld [vmem:[#allocation7] sm:$0xff]
        %v371 = vld [vmem:[#allocation7 + $0x8] sm:$0xff]
        %v372 = vld [vmem:[#allocation7 + $0x10] sm:$0xff]
        %v373 = vld [vmem:[#allocation7 + $0x18] sm:$0xff]
        %vm374 = vcmask 261120
        %v376 = vsel %vm374, %v369, 0
        %378 = vmatpush.msra.mxu0 0.0
        %379 = vmatpush.msra.mxu0 0.0
        %380 = vmatpush.msra.mxu0 0.0
        %381 = vmatpush.msra.mxu0 0.0
        %382 = vmatpush.msra.mxu0 0.0
        %383 = vmatpush.msra.mxu0 0.0
        %384 = vmatpush.msra.mxu0 0.0
        %385 = vmatpush.msra.mxu0 0.0
        %386 = vmatpush.msra.mxu0 0.0
        %387 = vmatpush.msra.mxu0 0.0
        %388 = vmatpush.msra.mxu0 0.0
        %389 = vmatpush.msra.mxu0 0.0
        %390 = vmatpush.msra.mxu0 %v373
        %391 = vmatpush.msra.mxu0 %v372
        %392 = vmatpush.msra.mxu0 %v371
        %393 = vmatpush.msra.mxu0 %v370
        %394 = vmatmul.f32.gmra.mxu0 %v376
        %v395 = vpop.f32.mrf.mxu0
        %v396 = vadd.f32 0.0, %v395
        %397 = vdwg.mxu0
        %v398 = vld [vmem:[#allocation8] sm:$0xff]
        %v399 = vld [vmem:[#allocation8 + $0x8] sm:$0xff]
        %v400 = vld [vmem:[#allocation8 + $0x10] sm:$0xff]
        %v401 = vld [vmem:[#allocation8 + $0x18] sm:$0xff]
        %v402 = vld [vmem:[%s368] sm:$0x1]
        %v404 = vperm.slane %v402, 0
        %406 = vmatpush.msra.mxu0 0.0
        %407 = vmatpush.msra.mxu0 0.0
        %408 = vmatpush.msra.mxu0 0.0
        %409 = vmatpush.msra.mxu0 0.0
        %410 = vmatpush.msra.mxu0 0.0
        %411 = vmatpush.msra.mxu0 0.0
        %412 = vmatpush.msra.mxu0 0.0
        %413 = vmatpush.msra.mxu0 0.0
        %414 = vmatpush.msra.mxu0 0.0
        %415 = vmatpush.msra.mxu0 0.0
        %416 = vmatpush.msra.mxu0 0.0
        %417 = vmatpush.msra.mxu0 0.0
        %418 = vmatpush.msra.mxu0 %v401
        %419 = vmatpush.msra.mxu0 %v400
        %420 = vmatpush.msra.mxu0 %v399
        %421 = vmatpush.msra.mxu0 %v398
        %422 = vmatmul.f32.gmra.mxu0 %v376
        %v423 = vpop.f32.mrf.mxu0
        %v424 = vadd.f32 %v404, %v423
        %425 = vdwg.mxu0
        %v426 = vld [vmem:[%s310] sm:$0xff]
        %vm427 = vcmask 64512
        %v429 = vsel %vm427, %v426, 0
        %v432 = vsel %vm427, %v396, 0
        %434 = vmatpush.xpose.msra.mxu0 0.0
        %435 = vmatpush.xpose.msra.mxu0 0.0
        %436 = vmatpush.xpose.msra.mxu0 0.0
        %437 = vmatpush.xpose.msra.mxu0 0.0
        %438 = vmatpush.xpose.msra.mxu0 0.0
        %439 = vmatpush.xpose.msra.mxu0 0.0
        %440 = vmatpush.xpose.msra.mxu0 0.0
        %441 = vmatpush.xpose.msra.mxu0 0.0
        %442 = vmatpush.xpose.msra.mxu0 0.0
        %443 = vmatpush.xpose.msra.mxu0 0.0
        %444 = vmatpush.xpose.msra.mxu0 0.0
        %445 = vmatpush.xpose.msra.mxu0 0.0
        %446 = vmatpush.xpose.msra.mxu0 0.0
        %447 = vmatpush.xpose.msra.mxu0 0.0
        %448 = vmatpush.xpose.msra.mxu0 0.0
        %449 = vmatpush.xpose.msra.mxu0 %v432
        %450 = vmatmul.f32.gmra.mxu0 %v429
        %v451 = vpop.f32.mrf.mxu0
        %v452 = vadd.f32 0.0, %v451
        %453 = vdwg.mxu0
        %v454 = vsel %vm427, %v452, -inf
        %455 = vmax.xlane.f32.xlu0 %v454
        %v456 = vpop.xlane.xlu0 %455
        %v457 = vsub.f32 %v452, %v456
        %v458 = vmul.f32 %v457, 1.442695
        %v459 = vpow.pop %v458
        %v460 = vsel %vm427, %v459, 0.0
        %461 = vadd.xlane.f32.xlu0 %v460
        %v462 = vpop.xlane.xlu0 %461
        %v464 = vsel %vm427, %v459, 0
        %466 = vmatpush.msra.mxu0 0.0
        %467 = vmatpush.msra.mxu0 0.0
        %468 = vmatpush.msra.mxu0 0.0
        %469 = vmatpush.msra.mxu0 0.0
        %470 = vmatpush.msra.mxu0 0.0
        %471 = vmatpush.msra.mxu0 0.0
        %472 = vmatpush.msra.mxu0 0.0
        %473 = vmatpush.msra.mxu0 0.0
        %474 = vmatpush.msra.mxu0 0.0
        %475 = vmatpush.msra.mxu0 0.0
        %476 = vmatpush.msra.mxu0 0.0
        %477 = vmatpush.msra.mxu0 0.0
        %478 = vmatpush.msra.mxu0 0.0
        %479 = vmatpush.msra.mxu0 0.0
        %480 = vmatpush.msra.mxu0 0.0
        %481 = vmatpush.msra.mxu0 %v424
        %482 = vmatmul.f32.gmra.mxu0 %v464
        %v483 = vpop.f32.mrf.mxu0
        %v484 = vadd.f32 0.0, %v483
        %485 = vdwg.mxu0
        %v486 = vrcp.pop %v462
        %v487 = vmul.f32 %v462, %v486
        %v488 = vsub.f32 1.0, %v487
        %v489 = vmul.f32 %v486, %v488
        %v490 = vadd.f32 %v486, %v489
        %vm491 = vweird.f32 %v462
        %vm492 = vweird.f32 %v486
        %vm493 = vmor %vm491, %vm492
        %v494 = vsel %vm493, %v486, %v490
        %v495 = vand.u32 2147483647, %v462
        %vm496 = vcmp.eq.f32.partialorder %v495, 8.507059e+37
        %v497 = vand.u32 %v462, 2147483648
        %v498 = vor.u32 1.1754944e-38, %v497
        %v499 = vsel %vm496, %v498, %v494
        %v500 = vmul.f32 %v484, %v499
        %501 = vst.msk [vmem:[%s365] sm:$0xff] %vm427, %v500
        %502 = vrot.lane.b32.xlu0 %v426, 120
        %v503 = vpop.permute.xlu0 %502
        %504 = vrot.lane.b32.xlu0 %v396, 120
        %v505 = vpop.permute.xlu0 %504
        %v506 = vsel %vm427, %v503, 0
        %v508 = vsel %vm427, %v505, 0
        %510 = vmatpush.xpose.msra.mxu0 0.0
        %511 = vmatpush.xpose.msra.mxu0 0.0
        %512 = vmatpush.xpose.msra.mxu0 0.0
        %513 = vmatpush.xpose.msra.mxu0 0.0
        %514 = vmatpush.xpose.msra.mxu0 0.0
        %515 = vmatpush.xpose.msra.mxu0 0.0
        %516 = vmatpush.xpose.msra.mxu0 0.0
        %517 = vmatpush.xpose.msra.mxu0 0.0
        %518 = vmatpush.xpose.msra.mxu0 0.0
        %519 = vmatpush.xpose.msra.mxu0 0.0
        %520 = vmatpush.xpose.msra.mxu0 0.0
        %521 = vmatpush.xpose.msra.mxu0 0.0
        %522 = vmatpush.xpose.msra.mxu0 0.0
        %523 = vmatpush.xpose.msra.mxu0 0.0
        %524 = vmatpush.xpose.msra.mxu0 0.0
        %525 = vmatpush.xpose.msra.mxu0 %v508
        %526 = vmatmul.f32.gmra.mxu0 %v506
        %v527 = vpop.f32.mrf.mxu0
        %v528 = vadd.f32 0.0, %v527
        %529 = vdwg.mxu0
        %v530 = vsel %vm427, %v528, -inf
        %531 = vmax.xlane.f32.xlu0 %v530
        %v532 = vpop.xlane.xlu0 %531
        %v533 = vsub.f32 %v528, %v532
        %v534 = vmul.f32 %v533, 1.442695
        %v535 = vpow.pop %v534
        %v536 = vsel %vm427, %v535, 0.0
        %537 = vadd.xlane.f32.xlu0 %v536
        %v538 = vpop.xlane.xlu0 %537
        %540 = vrot.lane.b32.xlu0 %v424, 120
        %v541 = vpop.permute.xlu0 %540
        %v544 = vsel %vm427, %v535, 0
        %546 = vmatpush.msra.mxu0 0.0
        %547 = vmatpush.msra.mxu0 0.0
        %548 = vmatpush.msra.mxu0 0.0
        %549 = vmatpush.msra.mxu0 0.0
        %550 = vmatpush.msra.mxu0 0.0
        %551 = vmatpush.msra.mxu0 0.0
        %552 = vmatpush.msra.mxu0 0.0
        %553 = vmatpush.msra.mxu0 0.0
        %554 = vmatpush.msra.mxu0 0.0
        %555 = vmatpush.msra.mxu0 0.0
        %556 = vmatpush.msra.mxu0 0.0
        %557 = vmatpush.msra.mxu0 0.0
        %558 = vmatpush.msra.mxu0 0.0
        %559 = vmatpush.msra.mxu0 0.0
        %560 = vmatpush.msra.mxu0 0.0
        %561 = vmatpush.msra.mxu0 %v541
        %562 = vmatmul.f32.gmra.mxu0 %v544
        %v563 = vpop.f32.mrf.mxu0
        %v564 = vadd.f32 0.0, %v563
        %565 = vdwg.mxu0
        %v566 = vrcp.pop %v538
        %v567 = vmul.f32 %v538, %v566
        %v568 = vsub.f32 1.0, %v567
        %v569 = vmul.f32 %v566, %v568
        %v570 = vadd.f32 %v566, %v569
        %vm571 = vweird.f32 %v538
        %vm572 = vweird.f32 %v566
        %vm573 = vmor %vm571, %vm572
        %v574 = vsel %vm573, %v566, %v570
        %v575 = vand.u32 2147483647, %v538
        %vm576 = vcmp.eq.f32.partialorder %v575, 8.507059e+37
        %v577 = vand.u32 %v538, 2147483648
        %v578 = vor.u32 1.1754944e-38, %v577
        %v579 = vsel %vm576, %v578, %v574
        %v580 = vmul.f32 %v564, %v579
        %582 = vrot.lane.b32.xlu0 %v580, 8
        %v583 = vpop.permute.xlu0 %582
        %vm585 = vcmask 130112
        %586 = vst.msk [vmem:[%s365] sm:$0xff] %vm585, %v583
        %587 = vrot.lane.b32.xlu0 %v426, 112
        %v588 = vpop.permute.xlu0 %587
        %589 = vrot.lane.b32.xlu0 %v396, 112
        %v590 = vpop.permute.xlu0 %589
        %v591 = vsel %vm427, %v588, 0
        %v593 = vsel %vm427, %v590, 0
        %595 = vmatpush.xpose.msra.mxu0 0.0
        %596 = vmatpush.xpose.msra.mxu0 0.0
        %597 = vmatpush.xpose.msra.mxu0 0.0
        %598 = vmatpush.xpose.msra.mxu0 0.0
        %599 = vmatpush.xpose.msra.mxu0 0.0
        %600 = vmatpush.xpose.msra.mxu0 0.0
        %601 = vmatpush.xpose.msra.mxu0 0.0
        %602 = vmatpush.xpose.msra.mxu0 0.0
        %603 = vmatpush.xpose.msra.mxu0 0.0
        %604 = vmatpush.xpose.msra.mxu0 0.0
        %605 = vmatpush.xpose.msra.mxu0 0.0
        %606 = vmatpush.xpose.msra.mxu0 0.0
        %607 = vmatpush.xpose.msra.mxu0 0.0
        %608 = vmatpush.xpose.msra.mxu0 0.0
        %609 = vmatpush.xpose.msra.mxu0 0.0
        %610 = vmatpush.xpose.msra.mxu0 %v593
        %611 = vmatmul.f32.gmra.mxu0 %v591
        %v612 = vpop.f32.mrf.mxu0
        %v613 = vadd.f32 0.0, %v612
        %614 = vdwg.mxu0
        %v615 = vsel %vm427, %v613, -inf
        %616 = vmax.xlane.f32.xlu0 %v615
        %v617 = vpop.xlane.xlu0 %616
        %v618 = vsub.f32 %v613, %v617
        %v619 = vmul.f32 %v618, 1.442695
        %v620 = vpow.pop %v619
        %v621 = vsel %vm427, %v620, 0.0
        %622 = vadd.xlane.f32.xlu0 %v621
        %v623 = vpop.xlane.xlu0 %622
        %624 = vrot.lane.b32.xlu0 %v424, 112
        %v625 = vpop.permute.xlu0 %624
        %v628 = vsel %vm427, %v620, 0
        %630 = vmatpush.msra.mxu0 0.0
        %631 = vmatpush.msra.mxu0 0.0
        %632 = vmatpush.msra.mxu0 0.0
        %633 = vmatpush.msra.mxu0 0.0
        %634 = vmatpush.msra.mxu0 0.0
        %635 = vmatpush.msra.mxu0 0.0
        %636 = vmatpush.msra.mxu0 0.0
        %637 = vmatpush.msra.mxu0 0.0
        %638 = vmatpush.msra.mxu0 0.0
        %639 = vmatpush.msra.mxu0 0.0
        %640 = vmatpush.msra.mxu0 0.0
        %641 = vmatpush.msra.mxu0 0.0
        %642 = vmatpush.msra.mxu0 0.0
        %643 = vmatpush.msra.mxu0 0.0
        %644 = vmatpush.msra.mxu0 0.0
        %645 = vmatpush.msra.mxu0 %v625
        %646 = vmatmul.f32.gmra.mxu0 %v628
        %v647 = vpop.f32.mrf.mxu0
        %v648 = vadd.f32 0.0, %v647
        %649 = vdwg.mxu0
        %v650 = vrcp.pop %v623
        %v651 = vmul.f32 %v623, %v650
        %v652 = vsub.f32 1.0, %v651
        %v653 = vmul.f32 %v650, %v652
        %v654 = vadd.f32 %v650, %v653
        %vm655 = vweird.f32 %v623
        %vm656 = vweird.f32 %v650
        %vm657 = vmor %vm655, %vm656
        %v658 = vsel %vm657, %v650, %v654
        %v659 = vand.u32 2147483647, %v623
        %vm660 = vcmp.eq.f32.partialorder %v659, 8.507059e+37
        %v661 = vand.u32 %v623, 2147483648
        %v662 = vor.u32 1.1754944e-38, %v661
        %v663 = vsel %vm660, %v662, %v658
        %v664 = vmul.f32 %v648, %v663
        %666 = vrot.lane.b32.xlu0 %v664, 16
        %v667 = vpop.permute.xlu0 %666
        %vm669 = vcmask 195712
        %670 = vst.msk [vmem:[%s365] sm:$0xff] %vm669, %v667
        %671 = vrot.lane.b32.xlu0 %v426, 104
        %v672 = vpop.permute.xlu0 %671
        %673 = vrot.lane.b32.xlu0 %v396, 104
        %v674 = vpop.permute.xlu0 %673
        %v675 = vsel %vm427, %v672, 0
        %v677 = vsel %vm427, %v674, 0
        %679 = vmatpush.xpose.msra.mxu0 0.0
        %680 = vmatpush.xpose.msra.mxu0 0.0
        %681 = vmatpush.xpose.msra.mxu0 0.0
        %682 = vmatpush.xpose.msra.mxu0 0.0
        %683 = vmatpush.xpose.msra.mxu0 0.0
        %684 = vmatpush.xpose.msra.mxu0 0.0
        %685 = vmatpush.xpose.msra.mxu0 0.0
        %686 = vmatpush.xpose.msra.mxu0 0.0
        %687 = vmatpush.xpose.msra.mxu0 0.0
        %688 = vmatpush.xpose.msra.mxu0 0.0
        %689 = vmatpush.xpose.msra.mxu0 0.0
        %690 = vmatpush.xpose.msra.mxu0 0.0
        %691 = vmatpush.xpose.msra.mxu0 0.0
        %692 = vmatpush.xpose.msra.mxu0 0.0
        %693 = vmatpush.xpose.msra.mxu0 0.0
        %694 = vmatpush.xpose.msra.mxu0 %v677
        %695 = vmatmul.f32.gmra.mxu0 %v675
        %v696 = vpop.f32.mrf.mxu0
        %v697 = vadd.f32 0.0, %v696
        %698 = vdwg.mxu0
        %v699 = vsel %vm427, %v697, -inf
        %700 = vmax.xlane.f32.xlu0 %v699
        %v701 = vpop.xlane.xlu0 %700
        %v702 = vsub.f32 %v697, %v701
        %v703 = vmul.f32 %v702, 1.442695
        %v704 = vpow.pop %v703
        %v705 = vsel %vm427, %v704, 0.0
        %706 = vadd.xlane.f32.xlu0 %v705
        %v707 = vpop.xlane.xlu0 %706
        %708 = vrot.lane.b32.xlu0 %v424, 104
        %v709 = vpop.permute.xlu0 %708
        %v712 = vsel %vm427, %v704, 0
        %714 = vmatpush.msra.mxu0 0.0
        %715 = vmatpush.msra.mxu0 0.0
        %716 = vmatpush.msra.mxu0 0.0
        %717 = vmatpush.msra.mxu0 0.0
        %718 = vmatpush.msra.mxu0 0.0
        %719 = vmatpush.msra.mxu0 0.0
        %720 = vmatpush.msra.mxu0 0.0
        %721 = vmatpush.msra.mxu0 0.0
        %722 = vmatpush.msra.mxu0 0.0
        %723 = vmatpush.msra.mxu0 0.0
        %724 = vmatpush.msra.mxu0 0.0
        %725 = vmatpush.msra.mxu0 0.0
        %726 = vmatpush.msra.mxu0 0.0
        %727 = vmatpush.msra.mxu0 0.0
        %728 = vmatpush.msra.mxu0 0.0
        %729 = vmatpush.msra.mxu0 %v709
        %730 = vmatmul.f32.gmra.mxu0 %v712
        %v731 = vpop.f32.mrf.mxu0
        %v732 = vadd.f32 0.0, %v731
        %733 = vdwg.mxu0
        %v734 = vrcp.pop %v707
        %v735 = vmul.f32 %v707, %v734
        %v736 = vsub.f32 1.0, %v735
        %v737 = vmul.f32 %v734, %v736
        %v738 = vadd.f32 %v734, %v737
        %vm739 = vweird.f32 %v707
        %vm740 = vweird.f32 %v734
        %vm741 = vmor %vm739, %vm740
        %v742 = vsel %vm741, %v734, %v738
        %v743 = vand.u32 2147483647, %v707
        %vm744 = vcmp.eq.f32.partialorder %v743, 8.507059e+37
        %v745 = vand.u32 %v707, 2147483648
        %v746 = vor.u32 1.1754944e-38, %v745
        %v747 = vsel %vm744, %v746, %v742
        %v748 = vmul.f32 %v732, %v747
        %750 = vrot.lane.b32.xlu0 %v748, 24
        %v751 = vpop.permute.xlu0 %750
        %vm753 = vcmask 261312
        %754 = vst.msk [vmem:[%s365] sm:$0xff] %vm753, %v751
        %s755 = sand.u32 %s189, 1
        %s756 = scalar_lea.sflag [#allocation4], %s755
        %s757 = sand.u32 %s189, 1
        %s758 = smul.addr %s757, 8
        %s759 = scalar_lea.vmem [#allocation10], %s758
        // Predicated region
        $region57: #{tpu_custom_call.1} parent=39 // pred_check
          %p760 = pneg %p199
        $region58: #{tpu_custom_call.1} parent=39 // pred_check_branch
          %762 = sbr.rel (%p760) target = $region60
        $region59: #{tpu_custom_call.1} parent=39 // pred_region
          %764 = vsyncadd %s756, 0
          %s765 = sadd.s32 %s32, %s31
          %s766 = smul.addr %s765, 8
          %s767 = scalar_lea.hbm %s5, %s766
          %s769 = sshll.u32 %s759, 4
          %s770 = int_to_ptr.vmem [resolvable:$true] %s769
          %s771 = sshll.u32 %s767, 4
          %s772 = int_to_ptr.hbm [resolvable:$true] %s771
          %774 = dma.vmem_to_hbm [thread:$0]  %s770, 128, %s772, %s756
        $region60: #{tpu_custom_call.1} parent=39 // pred_fallthru
          _
      $region40: #{tpu_custom_call.1} parent=5 // pred_fallthru
        _
      %p775 = scmp.le.s32.totalorder 2, %s21
      // Predicated region
      $region61: #{tpu_custom_call.1} parent=5 // pred_check
        %p776 = pneg %p775
      $region62: #{tpu_custom_call.1} parent=5 // pred_check_branch
        %778 = sbr.rel (%p776) target = $region64
      $region63: #{tpu_custom_call.1} parent=5 // pred_region
        %s779 = ssub.s32 %s21, 2
        // Predicated region
        $region65: #{tpu_custom_call.1} parent=63 // pred_check
          %p780 = pneg %p205
        $region66: #{tpu_custom_call.1} parent=63 // pred_check_branch
          %782 = sbr.rel (%p780) target = $region68
        $region67: #{tpu_custom_call.1} parent=63 // pred_region
          %s783 = sand.u32 %s190, 1
          %s784 = scalar_lea.sflag [#allocation4], %s783
          %s785 = sand.u32 %s190, 1
          %s786 = smul.addr %s785, 8
          %s787 = scalar_lea.vmem [#allocation10], %s786
          %789 = dma.done %s784, 128
        $region68: #{tpu_custom_call.1} parent=63 // pred_fallthru
          _
      $region64: #{tpu_custom_call.1} parent=5 // pred_fallthru
        _
    $region6: #{tpu_custom_call.1} parent=1 // loop_footer
      %s25 = sadd.s32 1, %s21
    $region7: #{tpu_custom_call.1} parent=1 // loop_footer_branch
      %20 = sbr.rel target = $region3
    $region8: #{tpu_custom_call.1} parent=1 // loop_exit
      _
    %790 = vsyncpa [#allocation3], 1
    %s791 = scalar_lea.sflag [#allocation3], 1
    %792 = vsyncpa %s791, 1
    %793 = vsyncpa [#allocation6], 1
    %s794 = scalar_lea.sflag [#allocation6], 1
    %795 = vsyncpa %s794, 1
    %796 = vsyncpa [#allocation9], 1
    %797 = vsyncpa [#allocation4], 1
    %s798 = scalar_lea.sflag [#allocation4], 1
    %799 = vsyncpa %s798, 1

</llo_original>
